<compile_context>
chip_gen: v7x
topology: tpu7x:2x2x1
jax: 0.10.0
libtpu: 0.0.40
codegen_flags: <defaults>
</compile_context>

<pallas_src>
import functools

import jax
import jax.numpy as jnp
from jax.experimental import pallas as pl
from jax.experimental.pallas import tpu as pltpu


def _sum_kernel(x_ref, acc_ref):
    """Pass 1: accumulate sum(exp(x)) in f32 into the resident (1,1) block;
    at the last grid step, replace it with its exact reciprocal."""

    @pl.when(pl.program_id(0) == 0)
    def _init():
        acc_ref[...] = jnp.zeros_like(acc_ref)

    ex = jnp.exp(x_ref[...].astype(jnp.float32))        # EUP, f32 compute path
    acc_ref[...] += jnp.sum(ex, keepdims=True)          # reduce, f32 accumulation

    @pl.when(pl.program_id(0) == pl.num_programs(0) - 1)
    def _finalize():
        acc_ref[...] = 1.0 / acc_ref[...]                # exact, once per launch


def _scale_kernel(x_ref, inv_ref, o_ref):
    """Pass 2: recompute exp (EUP, hidden under DMA) and broadcast-multiply (VPU)."""
    ex = jnp.exp(x_ref[...].astype(jnp.float32))
    o_ref[...] = (ex * inv_ref[...]).astype(o_ref.dtype)


@functools.partial(jax.jit, static_argnames=("lane_width", "block_rows"))
def global_softmax(x: jax.Array, *, lane_width: int = 512, block_rows: int = 512) -> jax.Array:
    """exp(x) / sum(exp(x)) over ALL elements (same semantics as the PyTorch module)."""
    orig_shape = x.shape
    out_dtype = x.dtype

    flat = x.reshape(-1)
    n = flat.shape[0]

    # ---- lane-dense 2-D layout + row-tile choice (all static) ---------------
    lw = lane_width if n >= lane_width * 8 else 128              # last dim: multiple of 128
    rows_needed = -(-n // lw)
    br = max(8, min(block_rows, ((rows_needed + 7) // 8) * 8))   # sublane dim: multiple of 8
    padded_rows = -(-rows_needed // br) * br
    num_blocks = padded_rows // br
    padded_n = padded_rows * lw

    if padded_n != n:
        # exp(-inf) == 0, so padding never perturbs the global sum.
        pad = jnp.full((padded_n - n,), -jnp.inf, dtype=flat.dtype)
        flat = jnp.concatenate([flat, pad])
    x2d = flat.reshape(padded_rows, lw)

    # ---- pass 1: global sum of exp(x), finalized to its reciprocal ----------
    inv_denom = pl.pallas_call(
        _sum_kernel,
        out_shape=jax.ShapeDtypeStruct((1, 1), jnp.float32),
        grid_spec=pltpu.PrefetchScalarGridSpec(
            num_scalar_prefetch=0,
            grid=(num_blocks,),
            in_specs=[pl.BlockSpec((br, lw), lambda i: (i, 0))],
            out_specs=pl.BlockSpec((1, 1), lambda i: (0, 0)),     # resident accumulator
        ),
        compiler_params=pltpu.CompilerParams(
            dimension_semantics=("arbitrary",),                   # reduction axis
        ),
    )(x2d)

    # ---- pass 2: recompute exp and rescale; parallel across tiles -----------
    y2d = pl.pallas_call(
        _scale_kernel,
        out_shape=jax.ShapeDtypeStruct((padded_rows, lw), out_dtype),
        grid_spec=pltpu.PrefetchScalarGridSpec(
            num_scalar_prefetch=0,
            grid=(num_blocks,),
            in_specs=[
                pl.BlockSpec((br, lw), lambda i: (i, 0)),
                pl.BlockSpec((1, 1), lambda i: (0, 0)),           # resident, DMA'd once
            ],
            out_specs=pl.BlockSpec((br, lw), lambda i: (i, 0)),
        ),
        compiler_params=pltpu.CompilerParams(
            dimension_semantics=("parallel",),                    # megacore-shardable
        ),
    )(x2d, inv_denom)

    return y2d.reshape(-1)[:n].reshape(orig_shape)


if __name__ == "__main__":
    key = jax.random.PRNGKey(0)
    k1, k2 = jax.random.split(key)

    # Small, tile-friendly input (global softmax over all 8*128 elements).
    x = jax.random.normal(k1, (8, 128), dtype=jnp.float32)
    y = jax.block_until_ready(global_softmax(x))

    ex = jnp.exp(x)
    ref = ex / jnp.sum(ex)
    assert y.shape == x.shape and y.dtype == x.dtype
    assert jnp.allclose(y, ref, rtol=1e-4, atol=1e-9)
    assert jnp.allclose(jnp.sum(y), 1.0, atol=1e-4)

    # Multi-block path: small tiles force 4 sequential accumulation steps in
    # pass 1 and 4 parallel steps in pass 2.
    x2 = jax.random.normal(k2, (32, 128), dtype=jnp.float32)
    y2 = jax.block_until_ready(global_softmax(x2, lane_width=128, block_rows=8))
    ex2 = jnp.exp(x2)
    ref2 = ex2 / jnp.sum(ex2)
    assert jnp.allclose(y2, ref2, rtol=1e-4, atol=1e-10)
    assert jnp.allclose(jnp.sum(y2), 1.0, atol=1e-4)

    # Ragged shape like the module's own example (length-3 vector) via -inf padding.
    x3 = jnp.array([1.0, 2.0, 3.0], dtype=jnp.float32)
    y3 = jax.block_until_ready(global_softmax(x3))
    ref3 = jnp.exp(x3) / jnp.sum(jnp.exp(x3))
    assert y3.shape == x3.shape
    assert jnp.allclose(y3, ref3, rtol=1e-4, atol=1e-7)

    print("KERNEL_OK")
</pallas_src>

<mosaic_0001>
module attributes {stable_mosaic.version = 11 : i64} {
  func.func @_sum_kernel(%arg0: i32, %arg1: memref<8x128xf32, #tpu.memory_space<vmem>>, %arg2: memref<1x1xf32, #tpu.memory_space<vmem>>) attributes {dimension_semantics = [#tpu.dimension_semantics<arbitrary>], iteration_bounds = array<i64: 1>, scalar_prefetch = 0 : i64, scratch_operands = 0 : i64, tpu.core_type = #tpu.core_type<tc>, window_params = [{transform_indices = @transform_0, window_bounds = array<i64: 8, 128>}, {pipeline_mode = #tpu.pipeline_mode<synchronous>, transform_indices = @transform_1, window_bounds = array<i64: 1, 1>}]} {
    %c0_i32 = arith.constant 0 : i32
    %0 = arith.cmpi eq, %arg0, %c0_i32 : i32
    %1 = arith.extui %0 : i1 to i32
    %c0_i32_0 = arith.constant 0 : i32
    %2 = arith.cmpi ne, %1, %c0_i32_0 : i32
    scf.if %2 {
      %cst_8 = arith.constant 0.000000e+00 : f32
      %16 = vector.broadcast %cst_8 : f32 to vector<1x1xf32>
      %c0_9 = arith.constant 0 : index
      %c0_10 = arith.constant 0 : index
      %17 = vector.load %arg2[%c0_9, %c0_10] : memref<1x1xf32, #tpu.memory_space<vmem>>, vector<1x1xf32>
      tpu.vector_store %arg2[%c0_9, %c0_10], %16 {strides = array<i32>} : memref<1x1xf32, #tpu.memory_space<vmem>>, vector<1x1xf32>,
    } else {
    }
    %c0 = arith.constant 0 : index
    %c0_1 = arith.constant 0 : index
    %3 = vector.load %arg1[%c0, %c0_1] : memref<8x128xf32, #tpu.memory_space<vmem>>, vector<8x128xf32>
    %4 = math.exp %3 : vector<8x128xf32>
    %c0_2 = arith.constant 0 : index
    %c0_3 = arith.constant 0 : index
    %5 = vector.load %arg2[%c0_2, %c0_3] : memref<1x1xf32, #tpu.memory_space<vmem>>, vector<1x1xf32>
    %6 = vector.shape_cast %4 : vector<8x128xf32> to vector<1x8x128xf32>
    %cst = arith.constant dense<0.000000e+00> : vector<1xf32>
    %7 = vector.multi_reduction <add>, %6, %cst [1, 2] : vector<1x8x128xf32> to vector<1xf32>
    %8 = vector.shape_cast %7 : vector<1xf32> to vector<1x1x1xf32>
    %9 = vector.extract %8[0, 0, 0] : f32 from vector<1x1x1xf32>
    %10 = vector.broadcast %9 : f32 to vector<1x1xf32>
    %11 = arith.addf %5, %10 : vector<1x1xf32>
    %c0_4 = arith.constant 0 : index
    %c0_5 = arith.constant 0 : index
    %12 = vector.load %arg2[%c0_4, %c0_5] : memref<1x1xf32, #tpu.memory_space<vmem>>, vector<1x1xf32>
    tpu.vector_store %arg2[%c0_4, %c0_5], %11 {strides = array<i32>} : memref<1x1xf32, #tpu.memory_space<vmem>>, vector<1x1xf32>,
    %c0_i32_6 = arith.constant 0 : i32
    %13 = arith.cmpi eq, %arg0, %c0_i32_6 : i32
    %14 = arith.extui %13 : i1 to i32
    %c0_i32_7 = arith.constant 0 : i32
    %15 = arith.cmpi ne, %14, %c0_i32_7 : i32
    scf.if %15 {
      %c0_8 = arith.constant 0 : index
      %c0_9 = arith.constant 0 : index
      %16 = vector.load %arg2[%c0_8, %c0_9] : memref<1x1xf32, #tpu.memory_space<vmem>>, vector<1x1xf32>
      %cst_10 = arith.constant 1.000000e+00 : f32
      %17 = vector.broadcast %cst_10 : f32 to vector<1x1xf32>
      %18 = arith.divf %17, %16 : vector<1x1xf32>
      %c0_11 = arith.constant 0 : index
      %c0_12 = arith.constant 0 : index
      %19 = vector.load %arg2[%c0_11, %c0_12] : memref<1x1xf32, #tpu.memory_space<vmem>>, vector<1x1xf32>
      tpu.vector_store %arg2[%c0_11, %c0_12], %18 {strides = array<i32>} : memref<1x1xf32, #tpu.memory_space<vmem>>, vector<1x1xf32>,
    } else {
    }
    return
  }
  func.func @transform_0(%arg0: i32) -> (i32, i32) {
    %c0_i32 = arith.constant 0 : i32
    %c0_i32_0 = arith.constant 0 : i32
    return %arg0, %c0_i32 : i32, i32
  }
  func.func @transform_1(%arg0: i32) -> (i32, i32) {
    %c0_i32 = arith.constant 0 : i32
    %c0_i32_0 = arith.constant 0 : i32
    %c0_i32_1 = arith.constant 0 : i32
    return %c0_i32, %c0_i32_0 : i32, i32
  }
}

module attributes {stable_mosaic.version = 11 : i64} {
  func.func @_scale_kernel(%arg0: i32, %arg1: memref<8x128xf32, #tpu.memory_space<vmem>>, %arg2: memref<1x1xf32, #tpu.memory_space<vmem>>, %arg3: memref<8x128xf32, #tpu.memory_space<vmem>>) attributes {dimension_semantics = [#tpu.dimension_semantics<parallel>], iteration_bounds = array<i64: 1>, scalar_prefetch = 0 : i64, scratch_operands = 0 : i64, tpu.core_type = #tpu.core_type<tc>, window_params = [{transform_indices = @transform_0, window_bounds = array<i64: 8, 128>}, {pipeline_mode = #tpu.pipeline_mode<synchronous>, transform_indices = @transform_1, window_bounds = array<i64: 1, 1>}, {transform_indices = @transform_2, window_bounds = array<i64: 8, 128>}]} {
    %c0 = arith.constant 0 : index
    %c0_0 = arith.constant 0 : index
    %0 = vector.load %arg1[%c0, %c0_0] : memref<8x128xf32, #tpu.memory_space<vmem>>, vector<8x128xf32>
    %1 = math.exp %0 : vector<8x128xf32>
    %c0_1 = arith.constant 0 : index
    %c0_2 = arith.constant 0 : index
    %2 = vector.load %arg2[%c0_1, %c0_2] : memref<1x1xf32, #tpu.memory_space<vmem>>, vector<1x1xf32>
    %3 = vector.broadcast %2 : vector<1x1xf32> to vector<8x128xf32>
    %4 = arith.mulf %1, %3 : vector<8x128xf32>
    %c0_3 = arith.constant 0 : index
    %c0_4 = arith.constant 0 : index
    %5 = vector.load %arg3[%c0_3, %c0_4] : memref<8x128xf32, #tpu.memory_space<vmem>>, vector<8x128xf32>
    tpu.vector_store %arg3[%c0_3, %c0_4], %4 {strides = array<i32>} : memref<8x128xf32, #tpu.memory_space<vmem>>, vector<8x128xf32>,
    return
  }
  func.func @transform_0(%arg0: i32) -> (i32, i32) {
    %c0_i32 = arith.constant 0 : i32
    %c0_i32_0 = arith.constant 0 : i32
    return %arg0, %c0_i32 : i32, i32
  }
  func.func @transform_1(%arg0: i32) -> (i32, i32) {
    %c0_i32 = arith.constant 0 : i32
    %c0_i32_0 = arith.constant 0 : i32
    %c0_i32_1 = arith.constant 0 : i32
    return %c0_i32, %c0_i32_0 : i32, i32
  }
  func.func @transform_2(%arg0: i32) -> (i32, i32) {
    %c0_i32 = arith.constant 0 : i32
    %c0_i32_0 = arith.constant 0 : i32
    return %arg0, %c0_i32 : i32, i32
  }
}

</mosaic_0001>

<llo_original>
// kernel: global_softmax.3
$region0: #{global_softmax.3}
  #allocation0 [shape = 'u32[]', space=smem, size = 0x4, offset = 0x4, fixed_abs, tag = 'smem constant byte address 0x4 - core index']
  #allocation1 [shape = 'u32[144,128]{1,0:T(1,128)}', space=vmem, size = 0x12000, scoped, tag = 'internal scratch']
  #allocation2 [shape = 'f32[1,1]{1,0:T(1,128)S(1)}', space=vmem, size = 0x200, scoped, tag = 'scoped memory for global_softmax.3']
  %s0 = inlined_call_operand.vmem [shape: f32[8,128], index: 0, kind: input, shape index: {}]
  %s1 = inlined_call_operand.<no memory space> [shape: f32[1,1], index: 1, kind: input, shape index: {}]
  %s2 = inlined_call_operand.hbm [shape: f32[8,128], index: 2, kind: output, shape index: {}]
  %s3 = sld [smem:[#allocation0]]
  $region18: #{global_softmax.3} parent=0
    _
  %s5 = ssub.s32 1, %s3
  %s6 = scalar_select 0, %s5, %s3
  %v7 = vstv %s1
  %8 = vst [vmem:[#allocation2] sm:$0x1] %v7
  $region1: #{global_softmax.3} parent=0
    #allocation3 [shape = 'u8[4096]{0}', space=vmem, size = 0x1000, scoped, tag = 'output window, operand 0, single buffered']
    #allocation4 [shape = 's32[1]{0}', space=sflag, size = 0x4, scoped, tag = 'scoped memory for global_softmax.3']
    %9 = vsyncpa [#allocation4], 0
    // Predicated region
    $region2: #{global_softmax.3} parent=1 // pred_check
      _
    $region3: #{global_softmax.3} parent=1 // pred_check_branch
      %11 = sbr.rel (0) target = $region5
    $region4: #{global_softmax.3} parent=1 // pred_region
      _
    $region5: #{global_softmax.3} parent=1 // pred_fallthru
      _
    // Predicated region
    $region6: #{global_softmax.3} parent=1 // pred_check
      _
    $region7: #{global_softmax.3} parent=1 // pred_check_branch
      %13 = sbr.rel (0) target = $region9
    $region8: #{global_softmax.3} parent=1 // pred_region
      _
    $region9: #{global_softmax.3} parent=1 // pred_fallthru
      _
    %v14 = vld [vmem:[%s0] sm:$0xff]
    %v15 = vmul.f32 %v14, 1.442695
    %v16 = vpow.pop %v15
    %v17 = vld [vmem:[#allocation2] sm:$0x1]
    %v19 = vlaneseq
    %v20 = vshrl.u32 %v19, 7
    %v21 = vsub.s32 0, %v20
    %v22 = vrot.slane %v17, %v21
    %23 = vset.pattern.permute.xlu0 0
    %24 = vperm.xlu0 %23, %v22
    %v25 = vpop.permute.xlu0 %24
    %v27 = vmul.f32 %v16, %v25
    %28 = vst [vmem:[#allocation3] sm:$0xff] %v27
    // Predicated region
    $region10: #{global_softmax.3} parent=1 // pred_check
      _
    $region11: #{global_softmax.3} parent=1 // pred_check_branch
      %30 = sbr.rel (0) target = $region13
    $region12: #{global_softmax.3} parent=1 // pred_region
      %s32 = ssub.s32 128, 128
      %33 = vsyncadd [#allocation4], %s32
      %s35 = sshll.u32 [#allocation3], 4
      %s36 = int_to_ptr.vmem [resolvable:$true] %s35
      %38 = dma.vmem_to_hbm [thread:$0]  %s36, 128, %s2, [#allocation4]
    $region13: #{global_softmax.3} parent=1 // pred_fallthru
      _
    // Predicated region
    $region14: #{global_softmax.3} parent=1 // pred_check
      _
    $region15: #{global_softmax.3} parent=1 // pred_check_branch
      %40 = sbr.rel (0) target = $region17
    $region16: #{global_softmax.3} parent=1 // pred_region
      %41 = dma.done [#allocation4], 128
    $region17: #{global_softmax.3} parent=1 // pred_fallthru
      _
    %42 = vsyncpa [#allocation4], 1

// kernel: global_softmax.2
$region0: #{global_softmax.2}
  #allocation0 [shape = 'u32[]', space=smem, size = 0x4, offset = 0x4, fixed_abs, tag = 'smem constant byte address 0x4 - core index']
  #allocation1 [shape = 'u32[144,128]{1,0:T(1,128)}', space=vmem, size = 0x12000, scoped, tag = 'internal scratch']
  %s0 = inlined_call_operand.hbm [shape: f32[8,128], index: 0, kind: input, shape index: {}]
  %s1 = inlined_call_operand.hbm [shape: f32[1,1], index: 1, kind: output, shape index: {}]
  %s2 = sld [smem:[#allocation0]]
  $region26: #{global_softmax.2} parent=0
    _
  %s4 = ssub.s32 1, %s2
  %s5 = scalar_select 0, %s4, %s2
  $region1: #{global_softmax.2} parent=0
    #allocation2 [shape = 'u8[4096]{0}', space=vmem, size = 0x1000, scoped, tag = 'input window, operand 0, single buffered']
    #allocation3 [shape = 's32[1]{0}', space=sflag, size = 0x4, scoped, tag = 'scoped memory for global_softmax.2']
    #allocation4 [shape = 's32[1]{0}', space=sflag, size = 0x4, scoped, tag = 'scoped memory for global_softmax.2']
    #allocation5 [shape = 'u8[512]{0}', space=vmem, size = 0x400, scoped, tag = 'output window, operand 0, single buffered']
    %6 = vsyncpa [#allocation3], 0
    %7 = vsyncpa [#allocation4], 0
    // Predicated region
    $region2: #{global_softmax.2} parent=1 // pred_check
      _
    $region3: #{global_softmax.2} parent=1 // pred_check_branch
      %9 = sbr.rel (0) target = $region5
    $region4: #{global_softmax.2} parent=1 // pred_region
      %s11 = ssub.s32 128, 128
      %12 = vsyncadd [#allocation3], %s11
      %s14 = sshll.u32 [#allocation2], 4
      %s15 = int_to_ptr.vmem [resolvable:$true] %s14
      %17 = dma.hbm_to_vmem [thread:$0]  %s0, 128, %s15, [#allocation3]
    $region5: #{global_softmax.2} parent=1 // pred_fallthru
      _
    // Predicated region
    $region6: #{global_softmax.2} parent=1 // pred_check
      _
    $region7: #{global_softmax.2} parent=1 // pred_check_branch
      %19 = sbr.rel (0) target = $region9
    $region8: #{global_softmax.2} parent=1 // pred_region
      %20 = dma.done [#allocation3], 128
    $region9: #{global_softmax.2} parent=1 // pred_fallthru
      _
    %p21 = scmp.eq.s32.totalorder 0, 0
    // Predicated region
    $region10: #{global_softmax.2} parent=1 // pred_check
      %p22 = pneg %p21
    $region11: #{global_softmax.2} parent=1 // pred_check_branch
      %24 = sbr.rel (%p22) target = $region13
    $region12: #{global_softmax.2} parent=1 // pred_region
      %vm25 = vcmask 0
      %26 = vst.msk [vmem:[#allocation5] sm:$0x1] %vm25, 0.0
    $region13: #{global_softmax.2} parent=1 // pred_fallthru
      _
    %v27 = vld [vmem:[#allocation2] sm:$0xff]
    %v28 = vmul.f32 %v27, 1.442695
    %v29 = vpow.pop %v28
    %v30 = vld [vmem:[#allocation5] sm:$0x1]
    %31 = vadd.xlane.f32.xlu0 %v29
    %v32 = vpop.xlane.xlu0 %31
    %v33 = vrot.slane %v32, 4
    %v34 = vadd.f32 %v32, %v33
    %v35 = vrot.slane %v34, 2
    %v36 = vadd.f32 %v34, %v35
    %v37 = vrot.slane %v36, 1
    %v38 = vadd.f32 %v36, %v37
    %s39 = vtos %v38
    %v40 = vstv %s39
    %v41 = vadd.f32 %v30, %v40
    %vm42 = vcmask 0
    %43 = vst.msk [vmem:[#allocation5] sm:$0x1] %vm42, %v41
    // Predicated region
    $region14: #{global_softmax.2} parent=1 // pred_check
      %p44 = pneg %p21
    $region15: #{global_softmax.2} parent=1 // pred_check_branch
      %46 = sbr.rel (%p44) target = $region17
    $region16: #{global_softmax.2} parent=1 // pred_region
      %v47 = vld [vmem:[#allocation5] sm:$0x1]
      %v48 = vrcp.pop %v47
      %v49 = vmul.f32 1.0, %v48
      %50 = vst.msk [vmem:[#allocation5] sm:$0x1] %vm42, %v49
    $region17: #{global_softmax.2} parent=1 // pred_fallthru
      _
    // Predicated region
    $region18: #{global_softmax.2} parent=1 // pred_check
      _
    $region19: #{global_softmax.2} parent=1 // pred_check_branch
      %52 = sbr.rel (0) target = $region21
    $region20: #{global_softmax.2} parent=1 // pred_region
      %s54 = ssub.s32 16, 16
      %55 = vsyncadd [#allocation4], %s54
      %s57 = sshll.u32 [#allocation5], 4
      %s58 = int_to_ptr.vmem [resolvable:$true] %s57
      %60 = dma.vmem_to_hbm [thread:$0]  %s58, 16, %s1, [#allocation4]
    $region21: #{global_softmax.2} parent=1 // pred_fallthru
      _
    // Predicated region
    $region22: #{global_softmax.2} parent=1 // pred_check
      _
    $region23: #{global_softmax.2} parent=1 // pred_check_branch
      %62 = sbr.rel (0) target = $region25
    $region24: #{global_softmax.2} parent=1 // pred_region
      %63 = dma.done [#allocation4], 16
    $region25: #{global_softmax.2} parent=1 // pred_fallthru
      _
    %64 = vsyncpa [#allocation3], 1
    %65 = vsyncpa [#allocation4], 1

</llo_original>
